<compile_context>
chip_gen: v5e
topology: v5e:2x2
jax: 0.10.0
libtpu: 0.0.40
codegen_flags: <defaults>
</compile_context>

<pallas_src>
import functools
import math

import jax
import jax.numpy as jnp
from jax import lax
from jax.experimental import pallas as pl
from jax.experimental.pallas import tpu as pltpu


def _sdpa_kernel(seed_ref, q_ref, k_ref, v_ref, *refs,
                 scale, dropout_p, training, has_mask):
    if has_mask:
        bias_ref, ctx_ref, attn_ref = refs
    else:
        ctx_ref, attn_ref = refs

    q = q_ref[0]      # (TQ, D)  input dtype — no f32 upcast before the MXU
    k = k_ref[0]      # (Lk, D)
    v = v_ref[0]      # (Lk, Dv)

    # Apply scale to q (Lq x D) instead of the (Lq x Lk) scores.
    # `if scale:` mirrors the PyTorch truthiness quirk (scale=0.0 skips scaling).
    if scale:
        q = q * jnp.asarray(scale, q.dtype)

    # scores = q @ k^T via dot_general contracting the last dims (no explicit
    # transpose through the XLU); f32 accumulation on the MXU.
    s = lax.dot_general(q, k, (((1,), (1,)), ((), ())),
                        preferred_element_type=jnp.float32)

    # masked_fill_(attn_mask, -inf) expressed as an additive bias (0 / -inf).
    if has_mask:
        s = s + bias_ref[0].astype(jnp.float32)

    # Numerically stable softmax over keys (torch Softmax(dim=2)).
    m = jnp.max(s, axis=-1, keepdims=True)
    e = jnp.exp(s - m)
    denom = jnp.sum(e, axis=-1, keepdims=True)
    # EUP approximate reciprocal + one Newton step on the (TQ,1) vector, then a
    # broadcast multiply (keeps the divide off the (TQ,Lk)-sized VALU path).
    r = pl.reciprocal(denom, approx=True)
    r = r * (2.0 - denom * r)
    attn = e * r

    # Dropout (only traced when training=True; identity in eval, like nn.Dropout).
    if training and dropout_p > 0.0:
        if dropout_p >= 1.0:
            attn = jnp.zeros_like(attn)
        else:
            nq = pl.num_programs(1)
            pltpu.prng_seed(seed_ref[0] + pl.program_id(0) * nq + pl.program_id(1))
            bits = pltpu.prng_random_bits(attn.shape)
            if bits.dtype != jnp.uint32:          # defensive; normally already u32
                bits = pltpu.bitcast(bits, jnp.uint32)
            thresh = jnp.uint32(min(int(round(dropout_p * (2 ** 32))), 2 ** 32 - 1))
            keep = bits >= thresh
            attn = jnp.where(keep, attn * jnp.float32(1.0 / (1.0 - dropout_p)), 0.0)

    attn_ref[0] = attn.astype(attn_ref.dtype)
    ctx_ref[0] = jnp.dot(attn.astype(v.dtype), v,
                         preferred_element_type=jnp.float32).astype(ctx_ref.dtype)


def _pick_q_tile(Lq, Lk, D, Dv, dtype, has_mask):
    """Per-chip q-tile size, shrunk to fit a conservative scoped-VMEM budget."""
    kind = ""
    try:
        kind = jax.devices()[0].device_kind.lower()
    except Exception:
        pass
    small_chip = ("v4" in kind) or ("v5" in kind)     # 128-wide MXU, 16 MiB scoped VMEM
    target = 128 if small_chip else 256               # v6e / v7x: 256-wide MXU

    if Lq <= target:
        return Lq

    itemsize = jnp.dtype(dtype).itemsize
    budget = (12 if small_chip else 24) * 1024 * 1024  # headroom under default scoped VMEM

    def fits(tq):
        stream = 2 * (tq * D + Lk * D + Lk * Dv + tq * Dv + tq * Lk) * itemsize
        if has_mask:
            stream += 2 * tq * Lk * itemsize
        scratch = 2 * tq * Lk * 4                      # f32 scores / exp temporaries
        return stream + scratch <= budget

    tq = target
    while tq > 8 and (Lq % tq != 0 or not fits(tq)):
        tq //= 2
    if Lq % tq != 0 or not fits(tq):
        return Lq                                      # fallback: single q tile
    return tq


def scaled_dot_product_attention(q, k, v, scale=None, attn_mask=None,
                                 attention_dropout=0.3, training=False, seed=0):
    """Pallas equivalent of ScaledDotProductAttention.forward -> (context, attention)."""
    B, Lq, D = q.shape
    Lk = k.shape[1]
    Dv = v.shape[2]
    has_mask = attn_mask is not None

    tq = _pick_q_tile(Lq, Lk, D, Dv, q.dtype, has_mask)
    nq = Lq // tq

    seed_arr = jnp.array([seed], dtype=jnp.int32)

    kernel = functools.partial(_sdpa_kernel, scale=scale,
                               dropout_p=float(attention_dropout),
                               training=bool(training), has_mask=has_mask)

    # index_maps receive the scalar-prefetch ref (seed) as a trailing positional arg.
    in_specs = [
        pl.BlockSpec((1, tq, D), lambda b, qi, seed: (b, qi, 0)),
        pl.BlockSpec((1, Lk, D), lambda b, qi, seed: (b, 0, 0)),    # K resident over q-tiles
        pl.BlockSpec((1, Lk, Dv), lambda b, qi, seed: (b, 0, 0)),   # V resident over q-tiles
    ]
    args = [q, k, v]
    if has_mask:
        bias = jnp.where(attn_mask,
                         jnp.asarray(-jnp.inf, q.dtype),
                         jnp.asarray(0, q.dtype))
        in_specs.append(pl.BlockSpec((1, tq, Lk), lambda b, qi, seed: (b, qi, 0)))
        args.append(bias)

    out_specs = [
        pl.BlockSpec((1, tq, Dv), lambda b, qi, seed: (b, qi, 0)),
        pl.BlockSpec((1, tq, Lk), lambda b, qi, seed: (b, qi, 0)),
    ]

    grid_spec = pltpu.PrefetchScalarGridSpec(
        num_scalar_prefetch=1,            # dropout seed lives in SMEM
        grid=(B, nq),
        in_specs=in_specs,
        out_specs=out_specs,
    )

    ctx, attn = pl.pallas_call(
        kernel,
        out_shape=(
            jax.ShapeDtypeStruct((B, Lq, Dv), q.dtype),
            jax.ShapeDtypeStruct((B, Lq, Lk), q.dtype),   # attn in input dtype
        ),
        grid_spec=grid_spec,
        compiler_params=pltpu.CompilerParams(
            dimension_semantics=("parallel", "parallel")),  # both axes shard across cores (v7x)
    )(seed_arr, *args)
    return ctx, attn


if __name__ == "__main__":
    key = jax.random.PRNGKey(0)
    kq, kk, kv = jax.random.split(key, 3)

    B, Lq, Lk, D, Dv = 2, 8, 16, 32, 32
    q = jax.random.normal(kq, (B, Lq, D), jnp.float32)
    k = jax.random.normal(kk, (B, Lk, D), jnp.float32)
    v = jax.random.normal(kv, (B, Lk, Dv), jnp.float32)

    scale = 1.0 / math.sqrt(D)
    # mask out the last 4 key positions for every query (True == masked, as in torch)
    attn_mask = jnp.zeros((B, Lq, Lk), bool).at[:, :, Lk - 4:].set(True)

    # eval mode: dropout is the identity (deterministic, checkable against reference)
    ctx, attn = scaled_dot_product_attention(q, k, v, scale=scale,
                                             attn_mask=attn_mask, training=False)
    jax.block_until_ready((ctx, attn))

    # pure-JAX reference check (masked variant)
    s = jnp.einsum('bqd,bkd->bqk', q, k) * scale
    s = jnp.where(attn_mask, -jnp.inf, s)
    ref_attn = jax.nn.softmax(s, axis=-1)
    ref_ctx = jnp.einsum('bqk,bkd->bqd', ref_attn, v)
    assert jnp.allclose(attn, ref_attn, atol=1e-4), "attention (masked) mismatch"
    assert jnp.allclose(ctx, ref_ctx, atol=1e-4), "context (masked) mismatch"

    # mask-free variant (no dummy-mask DMA stream)
    ctx2, attn2 = scaled_dot_product_attention(q, k, v, scale=scale,
                                               attn_mask=None, training=False)
    jax.block_until_ready((ctx2, attn2))
    ref_attn2 = jax.nn.softmax(jnp.einsum('bqd,bkd->bqk', q, k) * scale, axis=-1)
    ref_ctx2 = jnp.einsum('bqk,bkd->bqd', ref_attn2, v)
    assert jnp.allclose(attn2, ref_attn2, atol=1e-4), "attention (no-mask) mismatch"
    assert jnp.allclose(ctx2, ref_ctx2, atol=1e-4), "context (no-mask) mismatch"

    print("KERNEL_OK")
</pallas_src>

<mosaic_0001>
module attributes {stable_mosaic.version = 11 : i64} {
  func.func @_sdpa_kernel(%arg0: i32, %arg1: i32, %arg2: memref<1xi32, #tpu.memory_space<smem>>, %arg3: memref<1x8x32xf32, #tpu.memory_space<vmem>>, %arg4: memref<1x16x32xf32, #tpu.memory_space<vmem>>, %arg5: memref<1x16x32xf32, #tpu.memory_space<vmem>>, %arg6: memref<1x8x16xf32, #tpu.memory_space<vmem>>, %arg7: memref<1x8x32xf32, #tpu.memory_space<vmem>>, %arg8: memref<1x8x16xf32, #tpu.memory_space<vmem>>) attributes {dimension_semantics = [#tpu.dimension_semantics<parallel>, #tpu.dimension_semantics<parallel>], iteration_bounds = array<i64: 2, 1>, scalar_prefetch = 1 : i64, scratch_operands = 0 : i64, tpu.core_type = #tpu.core_type<tc>, window_params = [{transform_indices = @transform_0, window_bounds = array<i64: 1, 8, 32>}, {transform_indices = @transform_1, window_bounds = array<i64: 1, 16, 32>}, {transform_indices = @transform_2, window_bounds = array<i64: 1, 16, 32>}, {transform_indices = @transform_3, window_bounds = array<i64: 1, 8, 16>}, {transform_indices = @transform_4, window_bounds = array<i64: 1, 8, 32>}, {transform_indices = @transform_5, window_bounds = array<i64: 1, 8, 16>}]} {
    %c0 = arith.constant 0 : index
    %c0_0 = arith.constant 0 : index
    %c0_1 = arith.constant 0 : index
    %0 = vector.load %arg3[%c0, %c0_0, %c0_1] : memref<1x8x32xf32, #tpu.memory_space<vmem>>, vector<1x8x32xf32>
    %1 = vector.shape_cast %0 : vector<1x8x32xf32> to vector<8x32xf32>
    %c0_2 = arith.constant 0 : index
    %c0_3 = arith.constant 0 : index
    %c0_4 = arith.constant 0 : index
    %2 = vector.load %arg4[%c0_2, %c0_3, %c0_4] : memref<1x16x32xf32, #tpu.memory_space<vmem>>, vector<1x16x32xf32>
    %3 = vector.shape_cast %2 : vector<1x16x32xf32> to vector<16x32xf32>
    %c0_5 = arith.constant 0 : index
    %c0_6 = arith.constant 0 : index
    %c0_7 = arith.constant 0 : index
    %4 = vector.load %arg5[%c0_5, %c0_6, %c0_7] : memref<1x16x32xf32, #tpu.memory_space<vmem>>, vector<1x16x32xf32>
    %5 = vector.shape_cast %4 : vector<1x16x32xf32> to vector<16x32xf32>
    %cst = arith.constant 0.176776692 : f32
    %6 = vector.broadcast %cst : f32 to vector<8x32xf32>
    %7 = arith.mulf %1, %6 : vector<8x32xf32>
    %cst_8 = arith.constant dense<0.000000e+00> : vector<8x16xf32>
    %8 = tpu.matmul %7, %3, %cst_8 {dimension_numbers = #tpu.dot_dimension_numbers<[1], [1], [0], [0], [0, 0, 1, 0], [], []>} : vector<8x32xf32>, vector<16x32xf32>, vector<8x16xf32> -> vector<8x16xf32>
    %c0_9 = arith.constant 0 : index
    %c0_10 = arith.constant 0 : index
    %c0_11 = arith.constant 0 : index
    %9 = vector.load %arg6[%c0_9, %c0_10, %c0_11] : memref<1x8x16xf32, #tpu.memory_space<vmem>>, vector<1x8x16xf32>
    %10 = vector.shape_cast %9 : vector<1x8x16xf32> to vector<8x16xf32>
    %11 = arith.addf %8, %10 : vector<8x16xf32>
    %cst_12 = arith.constant dense<0xFF800000> : vector<8xf32>
    %12 = vector.multi_reduction <maximumf>, %11, %cst_12 [1] : vector<8x16xf32> to vector<8xf32>
    %13 = vector.shape_cast %12 : vector<8xf32> to vector<8x1xf32>
    %14 = vector.broadcast %13 : vector<8x1xf32> to vector<8x16xf32>
    %15 = arith.subf %11, %14 : vector<8x16xf32>
    %16 = math.exp %15 : vector<8x16xf32>
    %cst_13 = arith.constant dense<0.000000e+00> : vector<8xf32>
    %17 = vector.multi_reduction <add>, %16, %cst_13 [1] : vector<8x16xf32> to vector<8xf32>
    %18 = vector.shape_cast %17 : vector<8xf32> to vector<8x1xf32>
    %19 = tpu.reciprocal %18 {approx = true} : vector<8x1xf32> -> vector<8x1xf32>
    %20 = arith.mulf %18, %19 : vector<8x1xf32>
    %cst_14 = arith.constant 2.000000e+00 : f32
    %21 = vector.broadcast %cst_14 : f32 to vector<8x1xf32>
    %22 = arith.subf %21, %20 : vector<8x1xf32>
    %23 = arith.mulf %19, %22 : vector<8x1xf32>
    %24 = vector.broadcast %23 : vector<8x1xf32> to vector<8x16xf32>
    %25 = arith.mulf %16, %24 : vector<8x16xf32>
    %c0_15 = arith.constant 0 : index
    %c0_16 = arith.constant 0 : index
    %c0_17 = arith.constant 0 : index
    %26 = vector.load %arg8[%c0_15, %c0_16, %c0_17] : memref<1x8x16xf32, #tpu.memory_space<vmem>>, vector<1x8x16xf32>
    %27 = vector.shape_cast %26 : vector<1x8x16xf32> to vector<8x16xf32>
    %28 = vector.shape_cast %25 : vector<8x16xf32> to vector<1x8x16xf32>
    tpu.vector_store %arg8[%c0_15, %c0_16, %c0_17], %28 {strides = array<i32>} : memref<1x8x16xf32, #tpu.memory_space<vmem>>, vector<1x8x16xf32>,
    %cst_18 = arith.constant dense<0.000000e+00> : vector<8x32xf32>
    %29 = tpu.matmul %25, %5, %cst_18 {dimension_numbers = #tpu.dot_dimension_numbers<[1], [0], [0], [1], [0, 0, 1, 1], [], []>} : vector<8x16xf32>, vector<16x32xf32>, vector<8x32xf32> -> vector<8x32xf32>
    %c0_19 = arith.constant 0 : index
    %c0_20 = arith.constant 0 : index
    %c0_21 = arith.constant 0 : index
    %30 = vector.load %arg7[%c0_19, %c0_20, %c0_21] : memref<1x8x32xf32, #tpu.memory_space<vmem>>, vector<1x8x32xf32>
    %31 = vector.shape_cast %30 : vector<1x8x32xf32> to vector<8x32xf32>
    %32 = vector.shape_cast %29 : vector<8x32xf32> to vector<1x8x32xf32>
    tpu.vector_store %arg7[%c0_19, %c0_20, %c0_21], %32 {strides = array<i32>} : memref<1x8x32xf32, #tpu.memory_space<vmem>>, vector<1x8x32xf32>,
    return
  }
  func.func @transform_0(%arg0: i32, %arg1: i32, %arg2: memref<1xi32, #tpu.memory_space<smem>>) -> (i32, i32, i32) {
    %c0_i32 = arith.constant 0 : i32
    %c0_i32_0 = arith.constant 0 : i32
    return %arg0, %arg1, %c0_i32 : i32, i32, i32
  }
  func.func @transform_1(%arg0: i32, %arg1: i32, %arg2: memref<1xi32, #tpu.memory_space<smem>>) -> (i32, i32, i32) {
    %c0_i32 = arith.constant 0 : i32
    %c0_i32_0 = arith.constant 0 : i32
    %c0_i32_1 = arith.constant 0 : i32
    return %arg0, %c0_i32, %c0_i32_0 : i32, i32, i32
  }
  func.func @transform_2(%arg0: i32, %arg1: i32, %arg2: memref<1xi32, #tpu.memory_space<smem>>) -> (i32, i32, i32) {
    %c0_i32 = arith.constant 0 : i32
    %c0_i32_0 = arith.constant 0 : i32
    %c0_i32_1 = arith.constant 0 : i32
    return %arg0, %c0_i32, %c0_i32_0 : i32, i32, i32
  }
  func.func @transform_3(%arg0: i32, %arg1: i32, %arg2: memref<1xi32, #tpu.memory_space<smem>>) -> (i32, i32, i32) {
    %c0_i32 = arith.constant 0 : i32
    %c0_i32_0 = arith.constant 0 : i32
    return %arg0, %arg1, %c0_i32 : i32, i32, i32
  }
  func.func @transform_4(%arg0: i32, %arg1: i32, %arg2: memref<1xi32, #tpu.memory_space<smem>>) -> (i32, i32, i32) {
    %c0_i32 = arith.constant 0 : i32
    %c0_i32_0 = arith.constant 0 : i32
    return %arg0, %arg1, %c0_i32 : i32, i32, i32
  }
  func.func @transform_5(%arg0: i32, %arg1: i32, %arg2: memref<1xi32, #tpu.memory_space<smem>>) -> (i32, i32, i32) {
    %c0_i32 = arith.constant 0 : i32
    %c0_i32_0 = arith.constant 0 : i32
    return %arg0, %arg1, %c0_i32 : i32, i32, i32
  }
}

</mosaic_0001>

<llo_original>
// kernel: tpu_custom_call.1
$region0: #{tpu_custom_call.1}
  #allocation0 [shape = 'u32[]', space=smem, size = 0x4, offset = 0x4, fixed_abs, tag = 'smem constant byte address 0x4 - core index']
  #allocation1 [shape = 'u32[72,128]{1,0:T(1,128)}', space=vmem, size = 0x9000, scoped, tag = 'internal scratch']
  #allocation2 [shape = 's32[1]{0}', space=sflag, size = 0x4, scoped, tag = 'scoped memory for tpu_custom_call.1']
  #allocation3 [shape = 's32[1]{0:T(128)S(6)}', space=smem, size = 0x200, scoped, tag = 'prefetched SMEM operand 0']
  %s0 = inlined_call_operand.<no memory space> [shape: s32[1], index: 0, kind: input, shape index: {}]
  %s1 = inlined_call_operand.hbm [shape: f32[2,8,32], index: 1, kind: input, shape index: {}]
  %s2 = inlined_call_operand.hbm [shape: f32[2,16,32], index: 2, kind: input, shape index: {}]
  %s3 = inlined_call_operand.hbm [shape: f32[2,16,32], index: 3, kind: input, shape index: {}]
  %s4 = inlined_call_operand.hbm [shape: f32[2,8,16], index: 4, kind: input, shape index: {}]
  %s5 = inlined_call_operand.hbm [shape: f32[2,8,32], index: 5, kind: output, shape index: {0}]
  %s6 = inlined_call_operand.hbm [shape: f32[2,8,16], index: 6, kind: output, shape index: {1}]
  %7 = xla_tuple %s5, %s6
  %s8 = sld [smem:[#allocation0]]
  $region73: #{tpu_custom_call.1} parent=0
    _
  %s10 = ssub.s32 1, %s8
  %s11 = scalar_select 0, %s10, %s8
  %12 = sst [smem:[#allocation3]] %s0
  $region1: #{tpu_custom_call.1} parent=0
    #allocation4 [shape = 'u8[8192]{0}', space=vmem, size = 0x2000, scoped, tag = 'input window, operand 1']
    #allocation5 [shape = 's32[2]{0}', space=sflag, size = 0x8, scoped, tag = 'scoped memory for tpu_custom_call.1']
    #allocation6 [shape = 's32[2]{0}', space=sflag, size = 0x8, scoped, tag = 'scoped memory for tpu_custom_call.1']
    #allocation7 [shape = 'u8[16384]{0}', space=vmem, size = 0x4000, scoped, tag = 'input window, operand 2']
    #allocation8 [shape = 's32[2]{0}', space=sflag, size = 0x8, scoped, tag = 'scoped memory for tpu_custom_call.1']
    #allocation9 [shape = 'u8[16384]{0}', space=vmem, size = 0x4000, scoped, tag = 'input window, operand 3']
    #allocation10 [shape = 'u8[8192]{0}', space=vmem, size = 0x2000, scoped, tag = 'input window, operand 4']
    #allocation11 [shape = 's32[2]{0}', space=sflag, size = 0x8, scoped, tag = 'scoped memory for tpu_custom_call.1']
    #allocation12 [shape = 'u8[8192]{0}', space=vmem, size = 0x2000, scoped, tag = 'output window, operand 0']
    #allocation13 [shape = 'u8[8192]{0}', space=vmem, size = 0x2000, scoped, tag = 'output window, operand 1']
    #allocation14 [shape = 's32[2]{0}', space=sflag, size = 0x8, scoped, tag = 'scoped memory for tpu_custom_call.1']
    %13 = vsyncpa [#allocation5], 0
    %s14 = scalar_lea.sflag [#allocation5], 1
    %15 = vsyncpa %s14, 0
    %16 = vsyncpa [#allocation8], 0
    %s17 = scalar_lea.sflag [#allocation8], 1
    %18 = vsyncpa %s17, 0
    %19 = vsyncpa [#allocation11], 0
    %s20 = scalar_lea.sflag [#allocation11], 1
    %21 = vsyncpa %s20, 0
    %22 = vsyncpa [#allocation6], 0
    %s23 = scalar_lea.sflag [#allocation6], 1
    %24 = vsyncpa %s23, 0
    %25 = vsyncpa [#allocation14], 0
    %s26 = scalar_lea.sflag [#allocation14], 1
    %27 = vsyncpa %s26, 0
    loop: start=0, step=1, limit=4
    $region2: #{tpu_custom_call.1} parent=1 // loop_pre_header
      _
    $region3: #{tpu_custom_call.1} parent=1 // loop_header
      %s29 = sphi 0, %s33
      %p30 = scmp.ge.s32.totalorder %s29, 4
      %s36 = sphi 0, %s48
      %s37 = sphi 0, %s44
      %s38 = sphi 0, %s36
      %s39 = sphi 0, %s37
      %s40 = sphi 0, %s38
      %s41 = sphi 0, %s39
      %s53 = sphi 0, %s55
      %s56 = sphi 0, %s53
      %s57 = sphi 0, %s56
      %s73 = sphi 0, %s57
      %s79 = sphi 0, %s81
      %s82 = sphi 0, %s79
      %s83 = sphi 0, %s82
      %s99 = sphi 0, %s83
      %s105 = sphi 0, %s107
      %s108 = sphi 0, %s105
      %s109 = sphi 0, %s108
      %s125 = sphi 0, %s109
      %s133 = sphi 0, %s135
      %s136 = sphi 0, %s133
      %s137 = sphi 0, %s136
      %s153 = sphi 0, %s137
      %s161 = sphi 0, %s163
      %s164 = sphi 0, %s161
      %s165 = sphi 0, %s164
      %s181 = sphi 0, %s165
      %s189 = sphi 0, %s191
      %s192 = sphi 0, %s189
      %s193 = sphi 0, %s192
      %s209 = sphi 0, %s193
    $region4: #{tpu_custom_call.1} parent=1 // loop_header_branch
      %32 = sbr.rel (%p30) target = $region8
    $region5: #{tpu_custom_call.1} parent=1 // loop_body
      %s34 = ssub.s32 %s29, 1
      %s35 = ssub.s32 %s29, 2
      %s42 = sadd.s32 1, %s37
      %p43 = scmp.ge.s32.totalorder %s42, 1
      %s44 = scalar_select %p43, 0, %s42
      %s45 = sadd.s32 1, %s36
      %s46 = scalar_select %p43, %s45, %s36
      %p47 = scmp.ge.s32.totalorder %s46, 2
      %s48 = scalar_select %p47, 0, %s46
      %s49 = ssub.s32 %s36, %s48
      %s50 = ssub.s32 %s37, %s44
      %s51 = sor.u32 %s49, %s50
      %p52 = scmp.eq.s32.totalorder %s51, 0
      %s54 = sadd.s32 %s53, 1
      %s55 = scalar_select %p52, %s53, %s54
      %p58 = pneg %p52
      %p59 = scmp.eq.s32.totalorder %s29, 1
      %p60 = por %p58, %p59
      %p61 = scmp.ne.s32.totalorder %s53, %s56
      %p62 = scmp.eq.s32.totalorder %s29, 0
      %p63 = por %p61, %p62
      %p64 = scmp.ne.s32.totalorder %s53, %s56
      %p65 = scmp.eq.s32.totalorder %s34, 1
      %p66 = por %p64, %p65
      %p67 = scmp.ne.s32.totalorder %s56, %s57
      %p68 = scmp.eq.s32.totalorder %s34, 0
      %p69 = por %p67, %p68
      %p70 = scmp.ne.s32.totalorder %s56, %s57
      %p71 = scmp.eq.s32.totalorder %s35, 1
      %p72 = por %p70, %p71
      %p74 = scmp.ne.s32.totalorder %s57, %s73
      %p75 = scmp.eq.s32.totalorder %s35, 0
      %p76 = por %p74, %p75
      %s77 = ssub.s32 %s36, %s48
      %p78 = scmp.eq.s32.totalorder %s77, 0
      %s80 = sadd.s32 %s79, 1
      %s81 = scalar_select %p78, %s79, %s80
      %p84 = pneg %p78
      %p85 = scmp.eq.s32.totalorder %s29, 1
      %p86 = por %p84, %p85
      %p87 = scmp.ne.s32.totalorder %s79, %s82
      %p88 = scmp.eq.s32.totalorder %s29, 0
      %p89 = por %p87, %p88
      %p90 = scmp.ne.s32.totalorder %s79, %s82
      %p91 = scmp.eq.s32.totalorder %s34, 1
      %p92 = por %p90, %p91
      %p93 = scmp.ne.s32.totalorder %s82, %s83
      %p94 = scmp.eq.s32.totalorder %s34, 0
      %p95 = por %p93, %p94
      %p96 = scmp.ne.s32.totalorder %s82, %s83
      %p97 = scmp.eq.s32.totalorder %s35, 1
      %p98 = por %p96, %p97
      %p100 = scmp.ne.s32.totalorder %s83, %s99
      %p101 = scmp.eq.s32.totalorder %s35, 0
      %p102 = por %p100, %p101
      %s103 = ssub.s32 %s36, %s48
      %p104 = scmp.eq.s32.totalorder %s103, 0
      %s106 = sadd.s32 %s105, 1
      %s107 = scalar_select %p104, %s105, %s106
      %p110 = pneg %p104
      %p111 = scmp.eq.s32.totalorder %s29, 1
      %p112 = por %p110, %p111
      %p113 = scmp.ne.s32.totalorder %s105, %s108
      %p114 = scmp.eq.s32.totalorder %s29, 0
      %p115 = por %p113, %p114
      %p116 = scmp.ne.s32.totalorder %s105, %s108
      %p117 = scmp.eq.s32.totalorder %s34, 1
      %p118 = por %p116, %p117
      %p119 = scmp.ne.s32.totalorder %s108, %s109
      %p120 = scmp.eq.s32.totalorder %s34, 0
      %p121 = por %p119, %p120
      %p122 = scmp.ne.s32.totalorder %s108, %s109
      %p123 = scmp.eq.s32.totalorder %s35, 1
      %p124 = por %p122, %p123
      %p126 = scmp.ne.s32.totalorder %s109, %s125
      %p127 = scmp.eq.s32.totalorder %s35, 0
      %p128 = por %p126, %p127
      %s129 = ssub.s32 %s36, %s48
      %s130 = ssub.s32 %s37, %s44
      %s131 = sor.u32 %s129, %s130
      %p132 = scmp.eq.s32.totalorder %s131, 0
      %s134 = sadd.s32 %s133, 1
      %s135 = scalar_select %p132, %s133, %s134
      %p138 = pneg %p132
      %p139 = scmp.eq.s32.totalorder %s29, 1
      %p140 = por %p138, %p139
      %p141 = scmp.ne.s32.totalorder %s133, %s136
      %p142 = scmp.eq.s32.totalorder %s29, 0
      %p143 = por %p141, %p142
      %p144 = scmp.ne.s32.totalorder %s133, %s136
      %p145 = scmp.eq.s32.totalorder %s34, 1
      %p146 = por %p144, %p145
      %p147 = scmp.ne.s32.totalorder %s136, %s137
      %p148 = scmp.eq.s32.totalorder %s34, 0
      %p149 = por %p147, %p148
      %p150 = scmp.ne.s32.totalorder %s136, %s137
      %p151 = scmp.eq.s32.totalorder %s35, 1
      %p152 = por %p150, %p151
      %p154 = scmp.ne.s32.totalorder %s137, %s153
      %p155 = scmp.eq.s32.totalorder %s35, 0
      %p156 = por %p154, %p155
      %s157 = ssub.s32 %s36, %s48
      %s158 = ssub.s32 %s37, %s44
      %s159 = sor.u32 %s157, %s158
      %p160 = scmp.eq.s32.totalorder %s159, 0
      %s162 = sadd.s32 %s161, 1
      %s163 = scalar_select %p160, %s161, %s162
      %p166 = pneg %p160
      %p167 = scmp.eq.s32.totalorder %s29, 1
      %p168 = por %p166, %p167
      %p169 = scmp.ne.s32.totalorder %s161, %s164
      %p170 = scmp.eq.s32.totalorder %s29, 0
      %p171 = por %p169, %p170
      %p172 = scmp.ne.s32.totalorder %s161, %s164
      %p173 = scmp.eq.s32.totalorder %s34, 1
      %p174 = por %p172, %p173
      %p175 = scmp.ne.s32.totalorder %s164, %s165
      %p176 = scmp.eq.s32.totalorder %s34, 0
      %p177 = por %p175, %p176
      %p178 = scmp.ne.s32.totalorder %s164, %s165
      %p179 = scmp.eq.s32.totalorder %s35, 1
      %p180 = por %p178, %p179
      %p182 = scmp.ne.s32.totalorder %s165, %s181
      %p183 = scmp.eq.s32.totalorder %s35, 0
      %p184 = por %p182, %p183
      %s185 = ssub.s32 %s36, %s48
      %s186 = ssub.s32 %s37, %s44
      %s187 = sor.u32 %s185, %s186
      %p188 = scmp.eq.s32.totalorder %s187, 0
      %s190 = sadd.s32 %s189, 1
      %s191 = scalar_select %p188, %s189, %s190
      %p194 = pneg %p188
      %p195 = scmp.eq.s32.totalorder %s29, 1
      %p196 = por %p194, %p195
      %p197 = scmp.ne.s32.totalorder %s189, %s192
      %p198 = scmp.eq.s32.totalorder %s29, 0
      %p199 = por %p197, %p198
      %p200 = scmp.ne.s32.totalorder %s189, %s192
      %p201 = scmp.eq.s32.totalorder %s34, 1
      %p202 = por %p200, %p201
      %p203 = scmp.ne.s32.totalorder %s192, %s193
      %p204 = scmp.eq.s32.totalorder %s34, 0
      %p205 = por %p203, %p204
      %p206 = scmp.ne.s32.totalorder %s192, %s193
      %p207 = scmp.eq.s32.totalorder %s35, 1
      %p208 = por %p206, %p207
      %p210 = scmp.ne.s32.totalorder %s193, %s209
      %p211 = scmp.eq.s32.totalorder %s35, 0
      %p212 = por %p210, %p211
      %p213 = scmp.le.s32.totalorder 1, %s29
      %p214 = scmp.lt.s32.totalorder %s29, 3
      %p215 = pnand %p213, %p214
      %p216 = pneg %p215
      // Predicated region
      $region9: #{tpu_custom_call.1} parent=5 // pred_check
        _
      $region10: #{tpu_custom_call.1} parent=5 // pred_check_branch
        %218 = sbr.rel (%p215) target = $region12
      $region11: #{tpu_custom_call.1} parent=5 // pred_region
        %s219 = ssub.s32 %s29, 1
      $region12: #{tpu_custom_call.1} parent=5 // pred_fallthru
        _
      %p220 = scmp.lt.s32.totalorder %s29, 2
      // Predicated region
      $region13: #{tpu_custom_call.1} parent=5 // pred_check
        %p221 = pneg %p220
      $region14: #{tpu_custom_call.1} parent=5 // pred_check_branch
        %223 = sbr.rel (%p221) target = $region16
      $region15: #{tpu_custom_call.1} parent=5 // pred_region
        // Predicated region
        $region17: #{tpu_custom_call.1} parent=15 // pred_check
          %p224 = pneg %p63
        $region18: #{tpu_custom_call.1} parent=15 // pred_check_branch
          %226 = sbr.rel (%p224) target = $region20
        $region19: #{tpu_custom_call.1} parent=15 // pred_region
          %s227 = sand.u32 %s53, 1
          %s228 = scalar_lea.sflag [#allocation5], %s227
          %s229 = sand.u32 %s53, 1
          %s230 = smul.addr %s229, 8
          %s231 = scalar_lea.vmem [#allocation4], %s230
          %233 = vsyncadd %s228, 0
          %s234 = sadd.s32 %s37, %s36
          %s235 = smul.addr %s234, 8
          %s236 = scalar_lea.hbm %s1, %s235
          %s238 = sshll.u32 %s236, 4
          %s239 = int_to_ptr.hbm [resolvable:$true] %s238
          %s240 = sshll.u32 %s231, 4
          %s241 = int_to_ptr.vmem [resolvable:$true] %s240
          %243 = dma.hbm_to_vmem [thread:$0]  %s239, 128, %s241, %s228
        $region20: #{tpu_custom_call.1} parent=15 // pred_fallthru
          _
        // Predicated region
        $region21: #{tpu_custom_call.1} parent=15 // pred_check
          %p244 = pneg %p89
        $region22: #{tpu_custom_call.1} parent=15 // pred_check_branch
          %246 = sbr.rel (%p244) target = $region24
        $region23: #{tpu_custom_call.1} parent=15 // pred_region
          %s247 = sand.u32 %s29, 1
          %s248 = scalar_lea.sflag [#allocation8], %s247
          %s249 = sand.u32 %s79, 1
          %s250 = smul.addr %s249, 16
          %s251 = scalar_lea.vmem [#allocation7], %s250
          %253 = vsyncadd %s248, 0
          %s254 = smul.addr %s36, 2
          %s255 = smul.addr %s254, 8
          %s256 = scalar_lea.hbm %s2, %s255
          %s257 = sshll.u32 %s256, 4
          %s258 = int_to_ptr.hbm [resolvable:$true] %s257
          %s259 = sshll.u32 %s251, 4
          %s260 = int_to_ptr.vmem [resolvable:$true] %s259
          %265 = dma.hbm_to_vmem [thread:$0]  %s258, 256, %s260, %s248, 128, 128, 8
        $region24: #{tpu_custom_call.1} parent=15 // pred_fallthru
          _
        // Predicated region
        $region25: #{tpu_custom_call.1} parent=15 // pred_check
          %p266 = pneg %p115
        $region26: #{tpu_custom_call.1} parent=15 // pred_check_branch
          %268 = sbr.rel (%p266) target = $region28
        $region27: #{tpu_custom_call.1} parent=15 // pred_region
          %s269 = sand.u32 %s29, 1
          %s270 = scalar_lea.sflag [#allocation8], %s269
          %s271 = sand.u32 %s105, 1
          %s272 = smul.addr %s271, 16
          %s273 = scalar_lea.vmem [#allocation9], %s272
          %275 = vsyncadd %s270, 0
          %s276 = smul.addr %s36, 2
          %s277 = smul.addr %s276, 8
          %s278 = scalar_lea.hbm %s3, %s277
          %s279 = sshll.u32 %s278, 4
          %s280 = int_to_ptr.hbm [resolvable:$true] %s279
          %s281 = sshll.u32 %s273, 4
          %s282 = int_to_ptr.vmem [resolvable:$true] %s281
          %287 = dma.hbm_to_vmem [thread:$0]  %s280, 256, %s282, %s270, 128, 128, 8
        $region28: #{tpu_custom_call.1} parent=15 // pred_fallthru
          _
        // Predicated region
        $region29: #{tpu_custom_call.1} parent=15 // pred_check
          %p288 = pneg %p143
        $region30: #{tpu_custom_call.1} parent=15 // pred_check_branch
          %290 = sbr.rel (%p288) target = $region32
        $region31: #{tpu_custom_call.1} parent=15 // pred_region
          %s291 = sand.u32 %s133, 1
          %s292 = scalar_lea.sflag [#allocation11], %s291
          %s293 = sand.u32 %s133, 1
          %s294 = smul.addr %s293, 8
          %s295 = scalar_lea.vmem [#allocation10], %s294
          %297 = vsyncadd %s292, 0
          %s298 = sadd.s32 %s37, %s36
          %s299 = smul.addr %s298, 8
          %s300 = scalar_lea.hbm %s4, %s299
          %s302 = sshll.u32 %s300, 4
          %s303 = int_to_ptr.hbm [resolvable:$true] %s302
          %s304 = sshll.u32 %s295, 4
          %s305 = int_to_ptr.vmem [resolvable:$true] %s304
          %307 = dma.hbm_to_vmem [thread:$0]  %s303, 128, %s305, %s292
        $region32: #{tpu_custom_call.1} parent=15 // pred_fallthru
          _
      $region16: #{tpu_custom_call.1} parent=5 // pred_fallthru
        _
      %p308 = scmp.le.s32.totalorder 1, %s29
      %p309 = scmp.lt.s32.totalorder %s29, 3
      %p310 = pnand %p308, %p309
      %p311 = pneg %p310
      // Predicated region
      $region33: #{tpu_custom_call.1} parent=5 // pred_check
        _
      $region34: #{tpu_custom_call.1} parent=5 // pred_check_branch
        %313 = sbr.rel (%p310) target = $region36
      $region35: #{tpu_custom_call.1} parent=5 // pred_region
        %s314 = ssub.s32 %s29, 1
        %s315 = sand.u32 %s56, 1
        %s316 = scalar_lea.sflag [#allocation5], %s315
        %s317 = sand.u32 %s56, 1
        %s318 = smul.addr %s317, 8
        %s319 = scalar_lea.vmem [#allocation4], %s318
        // Predicated region
        $region37: #{tpu_custom_call.1} parent=35 // pred_check
          %p320 = pneg %p69
        $region38: #{tpu_custom_call.1} parent=35 // pred_check_branch
          %322 = sbr.rel (%p320) target = $region40
        $region39: #{tpu_custom_call.1} parent=35 // pred_region
          %324 = dma.done %s316, 128
        $region40: #{tpu_custom_call.1} parent=35 // pred_fallthru
          _
        %s325 = sand.u32 %s34, 1
        %s326 = scalar_lea.sflag [#allocation8], %s325
        %s327 = sand.u32 %s82, 1
        %s328 = smul.addr %s327, 16
        %s329 = scalar_lea.vmem [#allocation7], %s328
        // Predicated region
        $region41: #{tpu_custom_call.1} parent=35 // pred_check
          %p330 = pneg %p95
        $region42: #{tpu_custom_call.1} parent=35 // pred_check_branch
          %332 = sbr.rel (%p330) target = $region44
        $region43: #{tpu_custom_call.1} parent=35 // pred_region
          %334 = dma.done %s326, 256
        $region44: #{tpu_custom_call.1} parent=35 // pred_fallthru
          _
        %s335 = sand.u32 %s34, 1
        %s336 = scalar_lea.sflag [#allocation8], %s335
        %s337 = sand.u32 %s108, 1
        %s338 = smul.addr %s337, 16
        %s339 = scalar_lea.vmem [#allocation9], %s338
        // Predicated region
        $region45: #{tpu_custom_call.1} parent=35 // pred_check
          %p340 = pneg %p121
        $region46: #{tpu_custom_call.1} parent=35 // pred_check_branch
          %342 = sbr.rel (%p340) target = $region48
        $region47: #{tpu_custom_call.1} parent=35 // pred_region
          %344 = dma.done %s336, 256
        $region48: #{tpu_custom_call.1} parent=35 // pred_fallthru
          _
        %s345 = sand.u32 %s136, 1
        %s346 = scalar_lea.sflag [#allocation11], %s345
        %s347 = sand.u32 %s136, 1
        %s348 = smul.addr %s347, 8
        %s349 = scalar_lea.vmem [#allocation10], %s348
        // Predicated region
        $region49: #{tpu_custom_call.1} parent=35 // pred_check
          %p350 = pneg %p149
        $region50: #{tpu_custom_call.1} parent=35 // pred_check_branch
          %352 = sbr.rel (%p350) target = $region52
        $region51: #{tpu_custom_call.1} parent=35 // pred_region
          %354 = dma.done %s346, 128
        $region52: #{tpu_custom_call.1} parent=35 // pred_fallthru
          _
        %s355 = sand.u32 %s56, 1
        %s356 = scalar_lea.sflag [#allocation5], %s355
        %s357 = sand.u32 %s56, 1
        %s358 = smul.addr %s357, 8
        %s359 = scalar_lea.vmem [#allocation4], %s358
        %p360 = pneg %p69
        %p361 = pneg %p66
        %s362 = sand.u32 %s34, 1
        %s363 = scalar_lea.sflag [#allocation8], %s362
        %s364 = sand.u32 %s82, 1
        %s365 = smul.addr %s364, 16
        %s366 = scalar_lea.vmem [#allocation7], %s365
        %p367 = pneg %p95
        %p368 = pneg %p92
        %s369 = sand.u32 %s34, 1
        %s370 = scalar_lea.sflag [#allocation8], %s369
        %s371 = sand.u32 %s108, 1
        %s372 = smul.addr %s371, 16
        %s373 = scalar_lea.vmem [#allocation9], %s372
        %p374 = pneg %p121
        %p375 = pneg %p118
        %s376 = sand.u32 %s136, 1
        %s377 = scalar_lea.sflag [#allocation11], %s376
        %s378 = sand.u32 %s136, 1
        %s379 = smul.addr %s378, 8
        %s380 = scalar_lea.vmem [#allocation10], %s379
        %p381 = pneg %p149
        %p382 = pneg %p146
        %p383 = pneg %p177
        %p384 = pneg %p174
        %s385 = sand.u32 %s164, 1
        %s386 = scalar_lea.sflag [#allocation6], %s385
        %s387 = sand.u32 %s164, 1
        %s388 = smul.addr %s387, 8
        %s389 = scalar_lea.vmem [#allocation12], %s388
        %p390 = pneg %p205
        %p391 = pneg %p202
        %s392 = sand.u32 %s192, 1
        %s393 = scalar_lea.sflag [#allocation14], %s392
        %s394 = sand.u32 %s192, 1
        %s395 = smul.addr %s394, 8
        %s396 = scalar_lea.vmem [#allocation13], %s395
        %v397 = vld [vmem:[%s319] sm:$0xff]
        %v398 = vld [vmem:[%s329] sm:$0xff]
        %v399 = vld [vmem:[%s329 + $0x8] sm:$0xff]
        %v400 = vld [vmem:[%s339] sm:$0xff]
        %v401 = vld [vmem:[%s339 + $0x8] sm:$0xff]
        %v402 = vmul.f32 %v397, 0.17677669
        %v403 = vld [vmem:[%s349] sm:$0xff]
        %vm404 = vcmask 261120
        %v406 = vsel %vm404, %v402, 0
        %v409 = vsel %vm404, %v398, 0
        %v412 = vsel %vm404, %v399, 0
        %414 = vmatpush.xpose.msra.mxu0 0.0
        %415 = vmatpush.xpose.msra.mxu0 0.0
        %416 = vmatpush.xpose.msra.mxu0 0.0
        %417 = vmatpush.xpose.msra.mxu0 0.0
        %418 = vmatpush.xpose.msra.mxu0 0.0
        %419 = vmatpush.xpose.msra.mxu0 0.0
        %420 = vmatpush.xpose.msra.mxu0 0.0
        %421 = vmatpush.xpose.msra.mxu0 0.0
        %422 = vmatpush.xpose.msra.mxu0 0.0
        %423 = vmatpush.xpose.msra.mxu0 0.0
        %424 = vmatpush.xpose.msra.mxu0 0.0
        %425 = vmatpush.xpose.msra.mxu0 0.0
        %426 = vmatpush.xpose.msra.mxu0 0.0
        %427 = vmatpush.xpose.msra.mxu0 0.0
        %428 = vmatpush.xpose.msra.mxu0 %v412
        %429 = vmatpush.xpose.msra.mxu0 %v409
        %430 = vmatmul.f32.gmra.mxu0 %v406
        %v431 = vpop.f32.mrf.mxu0
        %v432 = vadd.f32 %v403, %v431
        %433 = vdwg.mxu0
        %vm434 = vcmask 130048
        %v435 = vsel %vm434, %v432, -inf
        %436 = vmax.xlane.f32.xlu0 %v435
        %v437 = vpop.xlane.xlu0 %436
        %v438 = vsub.f32 %v432, %v437
        %v439 = vmul.f32 %v438, 1.442695
        %v440 = vpow.pop %v439
        %v441 = vsel %vm434, %v440, 0.0
        %442 = vadd.xlane.f32.xlu0 %v441
        %v443 = vpop.xlane.xlu0 %442
        %v444 = vrcp.pop %v443
        %v445 = vmul.f32 %v443, %v444
        %v446 = vsub.f32 2.0, %v445
        %v447 = vmul.f32 %v444, %v446
        %v448 = vmul.f32 %v440, %v447
        %449 = vst.msk [vmem:[%s396] sm:$0xff] %vm434, %v448
        %v451 = vsel %vm434, %v448, 0
        %453 = vmatpush.msra.mxu0 0.0
        %454 = vmatpush.msra.mxu0 0.0
        %455 = vmatpush.msra.mxu0 0.0
        %456 = vmatpush.msra.mxu0 0.0
        %457 = vmatpush.msra.mxu0 0.0
        %458 = vmatpush.msra.mxu0 0.0
        %459 = vmatpush.msra.mxu0 0.0
        %460 = vmatpush.msra.mxu0 0.0
        %461 = vmatpush.msra.mxu0 0.0
        %462 = vmatpush.msra.mxu0 0.0
        %463 = vmatpush.msra.mxu0 0.0
        %464 = vmatpush.msra.mxu0 0.0
        %465 = vmatpush.msra.mxu0 0.0
        %466 = vmatpush.msra.mxu0 0.0
        %467 = vmatpush.msra.mxu0 %v401
        %468 = vmatpush.msra.mxu0 %v400
        %469 = vmatmul.f32.gmra.mxu0 %v451
        %v470 = vpop.f32.mrf.mxu0
        %v471 = vadd.f32 0.0, %v470
        %472 = vdwg.mxu0
        %473 = vst.msk [vmem:[%s389] sm:$0xff] %vm404, %v471
        %s474 = sand.u32 %s164, 1
        %s475 = scalar_lea.sflag [#allocation6], %s474
        %s476 = sand.u32 %s164, 1
        %s477 = smul.addr %s476, 8
        %s478 = scalar_lea.vmem [#allocation12], %s477
        %s479 = sand.u32 %s192, 1
        %s480 = scalar_lea.sflag [#allocation14], %s479
        %s481 = sand.u32 %s192, 1
        %s482 = smul.addr %s481, 8
        %s483 = scalar_lea.vmem [#allocation13], %s482
        // Predicated region
        $region53: #{tpu_custom_call.1} parent=35 // pred_check
          %p484 = pneg %p174
        $region54: #{tpu_custom_call.1} parent=35 // pred_check_branch
          %486 = sbr.rel (%p484) target = $region56
        $region55: #{tpu_custom_call.1} parent=35 // pred_region
          %488 = vsyncadd %s475, 0
          %s489 = sadd.s32 %s39, %s38
          %s490 = smul.addr %s489, 8
          %s491 = scalar_lea.hbm %s5, %s490
          %s493 = sshll.u32 %s478, 4
          %s494 = int_to_ptr.vmem [resolvable:$true] %s493
          %s495 = sshll.u32 %s491, 4
          %s496 = int_to_ptr.hbm [resolvable:$true] %s495
          %498 = dma.vmem_to_hbm [thread:$0]  %s494, 128, %s496, %s475
        $region56: #{tpu_custom_call.1} parent=35 // pred_fallthru
          _
        // Predicated region
        $region57: #{tpu_custom_call.1} parent=35 // pred_check
          %p499 = pneg %p202
        $region58: #{tpu_custom_call.1} parent=35 // pred_check_branch
          %501 = sbr.rel (%p499) target = $region60
        $region59: #{tpu_custom_call.1} parent=35 // pred_region
          %503 = vsyncadd %s480, 0
          %s504 = sadd.s32 %s39, %s38
          %s505 = smul.addr %s504, 8
          %s506 = scalar_lea.hbm %s6, %s505
          %s508 = sshll.u32 %s483, 4
          %s509 = int_to_ptr.vmem [resolvable:$true] %s508
          %s510 = sshll.u32 %s506, 4
          %s511 = int_to_ptr.hbm [resolvable:$true] %s510
          %513 = dma.vmem_to_hbm [thread:$0]  %s509, 128, %s511, %s480
        $region60: #{tpu_custom_call.1} parent=35 // pred_fallthru
          _
      $region36: #{tpu_custom_call.1} parent=5 // pred_fallthru
        _
      %p514 = scmp.le.s32.totalorder 2, %s29
      // Predicated region
      $region61: #{tpu_custom_call.1} parent=5 // pred_check
        %p515 = pneg %p514
      $region62: #{tpu_custom_call.1} parent=5 // pred_check_branch
        %517 = sbr.rel (%p515) target = $region64
      $region63: #{tpu_custom_call.1} parent=5 // pred_region
        %s518 = ssub.s32 %s29, 2
        // Predicated region
        $region65: #{tpu_custom_call.1} parent=63 // pred_check
          %p519 = pneg %p180
        $region66: #{tpu_custom_call.1} parent=63 // pred_check_branch
          %521 = sbr.rel (%p519) target = $region68
        $region67: #{tpu_custom_call.1} parent=63 // pred_region
          %s522 = sand.u32 %s165, 1
          %s523 = scalar_lea.sflag [#allocation6], %s522
          %s524 = sand.u32 %s165, 1
          %s525 = smul.addr %s524, 8
          %s526 = scalar_lea.vmem [#allocation12], %s525
          %528 = dma.done %s523, 128
        $region68: #{tpu_custom_call.1} parent=63 // pred_fallthru
          _
        // Predicated region
        $region69: #{tpu_custom_call.1} parent=63 // pred_check
          %p529 = pneg %p208
        $region70: #{tpu_custom_call.1} parent=63 // pred_check_branch
          %531 = sbr.rel (%p529) target = $region72
        $region71: #{tpu_custom_call.1} parent=63 // pred_region
          %s532 = sand.u32 %s193, 1
          %s533 = scalar_lea.sflag [#allocation14], %s532
          %s534 = sand.u32 %s193, 1
          %s535 = smul.addr %s534, 8
          %s536 = scalar_lea.vmem [#allocation13], %s535
          %538 = dma.done %s533, 128
        $region72: #{tpu_custom_call.1} parent=63 // pred_fallthru
          _
      $region64: #{tpu_custom_call.1} parent=5 // pred_fallthru
        _
    $region6: #{tpu_custom_call.1} parent=1 // loop_footer
      %s33 = sadd.s32 1, %s29
    $region7: #{tpu_custom_call.1} parent=1 // loop_footer_branch
      %28 = sbr.rel target = $region3
    $region8: #{tpu_custom_call.1} parent=1 // loop_exit
      _
    %539 = vsyncpa [#allocation5], 1
    %s540 = scalar_lea.sflag [#allocation5], 1
    %541 = vsyncpa %s540, 1
    %542 = vsyncpa [#allocation8], 1
    %s543 = scalar_lea.sflag [#allocation8], 1
    %544 = vsyncpa %s543, 1
    %545 = vsyncpa [#allocation11], 1
    %s546 = scalar_lea.sflag [#allocation11], 1
    %547 = vsyncpa %s546, 1
    %548 = vsyncpa [#allocation6], 1
    %s549 = scalar_lea.sflag [#allocation6], 1
    %550 = vsyncpa %s549, 1
    %551 = vsyncpa [#allocation14], 1
    %s552 = scalar_lea.sflag [#allocation14], 1
    %553 = vsyncpa %s552, 1

</llo_original>
